<compile_context>
chip_gen: v6e
topology: v6e:2x2x1
jax: 0.10.0
libtpu: 0.0.40
codegen_flags: <defaults>
</compile_context>

<pallas_src>
import jax
import jax.numpy as jnp
from jax import lax
from jax.experimental import pallas as pl
from jax.experimental.pallas import tpu as pltpu


LANE_CHUNK = 512  # lanes processed per inner-loop step (keeps temps in vregs)


def _round_up(a, m):
    return ((a + m - 1) // m) * m


def mlp_kernel(x_ref, w1_ref, b1_ref, w2_ref, b2_ref, o_ref):
    # Lane-dense layout: batch on lanes, features/hidden on sublanes.
    #   x_ref : (4, TB)    w1_ref: (H, 4)    b1_ref: (H, 1)
    #   w2_ref: (H, 1)     b2_ref: (1, 1)    o_ref : (1, TB)
    tb = x_ref.shape[1]
    chunk = LANE_CHUNK
    while tb % chunk:          # tb is always a multiple of 128
        chunk //= 2
    num_chunks = tb // chunk

    # Resident weights/biases: load once, outside the chunk loop.
    w1 = w1_ref[...]           # (H, 4)
    b1 = b1_ref[...]           # (H, 1)
    w2 = w2_ref[...]           # (H, 1)
    b2 = b2_ref[...]           # (1, 1)

    def chunk_body(c, carry):
        start = pl.multiple_of(c * chunk, chunk)
        xc = x_ref[:, pl.ds(start, chunk)]                 # (4, chunk)

        # Layer 1 (Linear(4, H)): 4 broadcast FMAs on the VPU.  Accumulator
        # starts from the k=0 product; bias added once at the end with
        # implicit (H,1) broadcasting (no materialized broadcast_to).
        h = w1[:, 0:1] * xc[0:1, :]
        for k in range(1, 4):                              # unrolled at trace time
            h = h + w1[:, k:k + 1] * xc[k:k + 1, :]
        h = jnp.maximum(h + b1, 0.0)                       # ReLU, (H, chunk)

        # Layer 2 (Linear(H, 1)): VPU multiply + XLU sublane reduce over H.
        out = jnp.sum(h * w2, axis=0, keepdims=True) + b2  # (1, chunk)
        o_ref[:, pl.ds(start, chunk)] = out.astype(o_ref.dtype)
        return carry

    lax.fori_loop(0, num_chunks, chunk_body, 0, unroll=min(4, num_chunks))


def _choose_batch_tile(B, block_b):
    # Enough tiles to keep each tile <= block_b; at least 2 tiles when B is
    # big enough for two >=128-lane tiles (so v7x's second TensorCore works).
    n_tiles = max(pl.cdiv(B, block_b), 1)
    if B >= 2 * 128:
        n_tiles = max(n_tiles, 2)
    # Tile size that minimizes tail padding, rounded to the 128-lane vreg width.
    tb = _round_up(pl.cdiv(B, n_tiles), 128)
    grid = pl.cdiv(B, tb)
    return tb, grid


def shallow_corrector_mlp_lanes(xt, w1, b1, w2, b2, *, block_b=8192):
    """Forward pass with the batch already on the lane axis.

    xt: (4, B) f32 (producer-native layout, no transpose/pad HBM round-trip);
    w1: (4, H); b1: (1, H); w2: (H, 1); b2: (1, 1)  ->  (1, B) f32.
    The last batch tile may be ragged; OOB lanes are masked at writeback.
    """
    B = xt.shape[1]
    H = w1.shape[1]
    tb, grid = _choose_batch_tile(B, block_b)

    w1t = w1.T          # (H, 4)   tiny weight reshuffles, resident in VMEM
    b1t = b1.T          # (H, 1)

    return pl.pallas_call(
        mlp_kernel,
        out_shape=jax.ShapeDtypeStruct((1, B), jnp.float32),
        grid=(grid,),
        in_specs=[
            pl.BlockSpec((4, tb), lambda i: (0, i)),   # streamed, double-buffered
            pl.BlockSpec((H, 4), lambda i: (0, 0)),    # resident weight
            pl.BlockSpec((H, 1), lambda i: (0, 0)),    # resident bias
            pl.BlockSpec((H, 1), lambda i: (0, 0)),    # resident weight
            pl.BlockSpec((1, 1), lambda i: (0, 0)),    # resident bias
        ],
        out_specs=pl.BlockSpec((1, tb), lambda i: (0, i)),   # lane-dense output
        compiler_params=pltpu.CompilerParams(
            dimension_semantics=("parallel",),   # shard batch tiles across v7x's 2 TCs
        ),
    )(xt, w1t, b1t, w2, b2)


def shallow_corrector_mlp(x, w1, b1, w2, b2, *, block_b=8192):
    """Module-faithful entry: x is (B, 4) as in the PyTorch forward.

    The x.T here is one extra XLA copy of x; producers that can emit the
    activation as (4, B) should call shallow_corrector_mlp_lanes directly.
    """
    B = x.shape[0]
    out = shallow_corrector_mlp_lanes(x.T.astype(jnp.float32), w1, b1, w2, b2,
                                      block_b=block_b)
    return out[0, :].reshape(B, 1)


def init_params(key, num_hidden_units=32, in_features=4, out_features=1):
    # Deterministic init mimicking PyTorch nn.Linear default:
    # U(-1/sqrt(fan_in), 1/sqrt(fan_in)) for both weight and bias.
    k1, k2, k3, k4 = jax.random.split(key, 4)
    bound1 = 1.0 / jnp.sqrt(jnp.float32(in_features))
    bound2 = 1.0 / jnp.sqrt(jnp.float32(num_hidden_units))
    # Stored as (in, out) — transpose of PyTorch's (out, in) — so math is x @ W.
    w1 = jax.random.uniform(k1, (in_features, num_hidden_units), jnp.float32,
                            -bound1, bound1)
    b1 = jax.random.uniform(k2, (1, num_hidden_units), jnp.float32, -bound1, bound1)
    w2 = jax.random.uniform(k3, (num_hidden_units, out_features), jnp.float32,
                            -bound2, bound2)
    b2 = jax.random.uniform(k4, (1, out_features), jnp.float32, -bound2, bound2)
    return w1, b1, w2, b2


def reference_mlp(x, w1, b1, w2, b2):
    h = jnp.maximum(x @ w1 + b1, 0.0)
    return h @ w2 + b2


if __name__ == "__main__":
    key = jax.random.PRNGKey(0)
    k_x, k_p = jax.random.split(key)

    num_hidden_units = 32
    w1, b1, w2, b2 = init_params(k_p, num_hidden_units=num_hidden_units)

    # (a) Producer-native (4, B) lane layout with a non-multiple-of-128 batch,
    #     exercising the ragged last tile (no explicit pad anywhere).
    batch = 200
    xt = jax.random.normal(k_x, (4, batch), jnp.float32)
    out = jax.block_until_ready(shallow_corrector_mlp_lanes(xt, w1, b1, w2, b2))
    ref = reference_mlp(xt.T, w1, b1, w2, b2)
    assert out.shape == (1, batch)
    assert jnp.allclose(out.reshape(batch, 1), ref, atol=1e-5, rtol=1e-5)

    # (b) Module-faithful (B, 4) entry at a tiny batch.
    batch2 = 8
    x2 = jax.random.normal(k_x, (batch2, 4), jnp.float32)
    out2 = jax.block_until_ready(shallow_corrector_mlp(x2, w1, b1, w2, b2))
    ref2 = reference_mlp(x2, w1, b1, w2, b2)
    assert out2.shape == (batch2, 1)
    assert jnp.allclose(out2, ref2, atol=1e-5, rtol=1e-5)

    print("KERNEL_OK")
</pallas_src>

<mosaic_0001>
module attributes {stable_mosaic.version = 11 : i64} {
  func.func @mlp_kernel(%arg0: i32, %arg1: memref<4x256xf32, #tpu.memory_space<vmem>>, %arg2: memref<32x4xf32, #tpu.memory_space<vmem>>, %arg3: memref<32x1xf32, #tpu.memory_space<vmem>>, %arg4: memref<32x1xf32, #tpu.memory_space<vmem>>, %arg5: memref<1x1xf32, #tpu.memory_space<vmem>>, %arg6: memref<1x256xf32, #tpu.memory_space<vmem>>) attributes {dimension_semantics = [#tpu.dimension_semantics<parallel>], iteration_bounds = array<i64: 1>, scalar_prefetch = 0 : i64, scratch_operands = 0 : i64, tpu.core_type = #tpu.core_type<tc>, window_params = [{transform_indices = @transform_0, window_bounds = array<i64: 4, 256>}, {pipeline_mode = #tpu.pipeline_mode<synchronous>, transform_indices = @transform_1, window_bounds = array<i64: 32, 4>}, {pipeline_mode = #tpu.pipeline_mode<synchronous>, transform_indices = @transform_2, window_bounds = array<i64: 32, 1>}, {pipeline_mode = #tpu.pipeline_mode<synchronous>, transform_indices = @transform_3, window_bounds = array<i64: 32, 1>}, {pipeline_mode = #tpu.pipeline_mode<synchronous>, transform_indices = @transform_4, window_bounds = array<i64: 1, 1>}, {transform_indices = @transform_5, window_bounds = array<i64: 1, 256>}]} {
    %c0 = arith.constant 0 : index
    %c0_0 = arith.constant 0 : index
    %0 = vector.load %arg2[%c0, %c0_0] : memref<32x4xf32, #tpu.memory_space<vmem>>, vector<32x4xf32>
    %c0_1 = arith.constant 0 : index
    %c0_2 = arith.constant 0 : index
    %1 = vector.load %arg3[%c0_1, %c0_2] : memref<32x1xf32, #tpu.memory_space<vmem>>, vector<32x1xf32>
    %c0_3 = arith.constant 0 : index
    %c0_4 = arith.constant 0 : index
    %2 = vector.load %arg4[%c0_3, %c0_4] : memref<32x1xf32, #tpu.memory_space<vmem>>, vector<32x1xf32>
    %c0_5 = arith.constant 0 : index
    %c0_6 = arith.constant 0 : index
    %3 = vector.load %arg5[%c0_5, %c0_6] : memref<1x1xf32, #tpu.memory_space<vmem>>, vector<1x1xf32>
    %c0_i32 = arith.constant 0 : i32
    %c256_i32 = arith.constant 256 : i32
    %4 = arith.muli %c0_i32, %c256_i32 : i32
    %5 = tpu.assume_multiple %4, 256 : i32
    %c0_7 = arith.constant 0 : index
    %6 = arith.index_cast %5 : i32 to index
    %7 = vector.load %arg1[%c0_7, %6] : memref<4x256xf32, #tpu.memory_space<vmem>>, vector<4x256xf32>
    %8 = vector.extract_strided_slice %0 {offsets = [0, 0], sizes = [32, 1], strides = [1, 1]} : vector<32x4xf32> to vector<32x1xf32>
    %9 = vector.extract_strided_slice %7 {offsets = [0, 0], sizes = [1, 256], strides = [1, 1]} : vector<4x256xf32> to vector<1x256xf32>
    %10 = vector.broadcast %8 : vector<32x1xf32> to vector<32x256xf32>
    %11 = vector.broadcast %9 : vector<1x256xf32> to vector<32x256xf32>
    %12 = arith.mulf %10, %11 : vector<32x256xf32>
    %13 = vector.extract_strided_slice %0 {offsets = [0, 1], sizes = [32, 1], strides = [1, 1]} : vector<32x4xf32> to vector<32x1xf32>
    %14 = vector.extract_strided_slice %7 {offsets = [1, 0], sizes = [1, 256], strides = [1, 1]} : vector<4x256xf32> to vector<1x256xf32>
    %15 = vector.broadcast %13 : vector<32x1xf32> to vector<32x256xf32>
    %16 = vector.broadcast %14 : vector<1x256xf32> to vector<32x256xf32>
    %17 = arith.mulf %15, %16 : vector<32x256xf32>
    %18 = arith.addf %12, %17 : vector<32x256xf32>
    %19 = vector.extract_strided_slice %0 {offsets = [0, 2], sizes = [32, 1], strides = [1, 1]} : vector<32x4xf32> to vector<32x1xf32>
    %20 = vector.extract_strided_slice %7 {offsets = [2, 0], sizes = [1, 256], strides = [1, 1]} : vector<4x256xf32> to vector<1x256xf32>
    %21 = vector.broadcast %19 : vector<32x1xf32> to vector<32x256xf32>
    %22 = vector.broadcast %20 : vector<1x256xf32> to vector<32x256xf32>
    %23 = arith.mulf %21, %22 : vector<32x256xf32>
    %24 = arith.addf %18, %23 : vector<32x256xf32>
    %25 = vector.extract_strided_slice %0 {offsets = [0, 3], sizes = [32, 1], strides = [1, 1]} : vector<32x4xf32> to vector<32x1xf32>
    %26 = vector.extract_strided_slice %7 {offsets = [3, 0], sizes = [1, 256], strides = [1, 1]} : vector<4x256xf32> to vector<1x256xf32>
    %27 = vector.broadcast %25 : vector<32x1xf32> to vector<32x256xf32>
    %28 = vector.broadcast %26 : vector<1x256xf32> to vector<32x256xf32>
    %29 = arith.mulf %27, %28 : vector<32x256xf32>
    %30 = arith.addf %24, %29 : vector<32x256xf32>
    %31 = vector.broadcast %1 : vector<32x1xf32> to vector<32x256xf32>
    %32 = arith.addf %30, %31 : vector<32x256xf32>
    %cst = arith.constant 0.000000e+00 : f32
    %33 = vector.broadcast %cst : f32 to vector<32x256xf32>
    %34 = arith.maximumf %32, %33 : vector<32x256xf32>
    %35 = vector.broadcast %2 : vector<32x1xf32> to vector<32x256xf32>
    %36 = arith.mulf %34, %35 : vector<32x256xf32>
    %cst_8 = arith.constant dense<0.000000e+00> : vector<256xf32>
    %37 = vector.multi_reduction <add>, %36, %cst_8 [0] : vector<32x256xf32> to vector<256xf32>
    %38 = vector.shape_cast %37 : vector<256xf32> to vector<1x256xf32>
    %39 = vector.broadcast %3 : vector<1x1xf32> to vector<1x256xf32>
    %40 = arith.addf %38, %39 : vector<1x256xf32>
    %c0_9 = arith.constant 0 : index
    %41 = arith.index_cast %5 : i32 to index
    %42 = vector.load %arg6[%c0_9, %41] : memref<1x256xf32, #tpu.memory_space<vmem>>, vector<1x256xf32>
    tpu.vector_store %arg6[%c0_9, %41], %40 {strides = array<i32>} : memref<1x256xf32, #tpu.memory_space<vmem>>, vector<1x256xf32>,
    %c1_i32 = arith.constant 1 : i32
    return
  }
  func.func @transform_0(%arg0: i32) -> (i32, i32) {
    %c0_i32 = arith.constant 0 : i32
    %c0_i32_0 = arith.constant 0 : i32
    return %c0_i32, %arg0 : i32, i32
  }
  func.func @transform_1(%arg0: i32) -> (i32, i32) {
    %c0_i32 = arith.constant 0 : i32
    %c0_i32_0 = arith.constant 0 : i32
    %c0_i32_1 = arith.constant 0 : i32
    return %c0_i32, %c0_i32_0 : i32, i32
  }
  func.func @transform_2(%arg0: i32) -> (i32, i32) {
    %c0_i32 = arith.constant 0 : i32
    %c0_i32_0 = arith.constant 0 : i32
    %c0_i32_1 = arith.constant 0 : i32
    return %c0_i32, %c0_i32_0 : i32, i32
  }
  func.func @transform_3(%arg0: i32) -> (i32, i32) {
    %c0_i32 = arith.constant 0 : i32
    %c0_i32_0 = arith.constant 0 : i32
    %c0_i32_1 = arith.constant 0 : i32
    return %c0_i32, %c0_i32_0 : i32, i32
  }
  func.func @transform_4(%arg0: i32) -> (i32, i32) {
    %c0_i32 = arith.constant 0 : i32
    %c0_i32_0 = arith.constant 0 : i32
    %c0_i32_1 = arith.constant 0 : i32
    return %c0_i32, %c0_i32_0 : i32, i32
  }
  func.func @transform_5(%arg0: i32) -> (i32, i32) {
    %c0_i32 = arith.constant 0 : i32
    %c0_i32_0 = arith.constant 0 : i32
    return %c0_i32, %arg0 : i32, i32
  }
}

</mosaic_0001>

<llo_original>
// kernel: tpu_custom_call.1
$region0: #{tpu_custom_call.1}
  #allocation0 [shape = 'u32[]', space=smem, size = 0x4, offset = 0x4, fixed_abs, tag = 'smem constant byte address 0x4 - core index']
  #allocation1 [shape = 'u32[144,128]{1,0:T(1,128)}', space=vmem, size = 0x12000, scoped, tag = 'internal scratch']
  #allocation2 [shape = 'f32[1,1]{1,0:T(1,128)S(1)}', space=vmem, size = 0x200, scoped, tag = 'scoped memory for tpu_custom_call.1']
  %s0 = inlined_call_operand.vmem [shape: f32[4,200], index: 0, kind: input, shape index: {}]
  %s1 = inlined_call_operand.vmem [shape: f32[32,4], index: 1, kind: input, shape index: {}]
  %s2 = inlined_call_operand.vmem [shape: f32[32,1], index: 2, kind: input, shape index: {}]
  %s3 = inlined_call_operand.vmem [shape: f32[32,1], index: 3, kind: input, shape index: {}]
  %s4 = inlined_call_operand.<no memory space> [shape: f32[1,1], index: 4, kind: input, shape index: {}]
  %s5 = inlined_call_operand.hbm [shape: f32[1,200], index: 5, kind: output, shape index: {}]
  %s6 = sld [smem:[#allocation0]]
  $region30: #{tpu_custom_call.1} parent=0
    _
  %s8 = ssub.s32 1, %s6
  %s9 = scalar_select 0, %s8, %s6
  %v10 = vstv %s4
  %11 = vst [vmem:[#allocation2] sm:$0x1] %v10
  $region1: #{tpu_custom_call.1} parent=0
    #allocation3 [shape = 'u8[1024]{0}', space=vmem, size = 0x400, scoped, tag = 'output window, operand 0, single buffered']
    #allocation4 [shape = 's32[1]{0}', space=sflag, size = 0x4, scoped, tag = 'scoped memory for tpu_custom_call.1']
    %12 = vsyncpa [#allocation4], 0
    // Predicated region
    $region2: #{tpu_custom_call.1} parent=1 // pred_check
      _
    $region3: #{tpu_custom_call.1} parent=1 // pred_check_branch
      %14 = sbr.rel (0) target = $region5
    $region4: #{tpu_custom_call.1} parent=1 // pred_region
      _
    $region5: #{tpu_custom_call.1} parent=1 // pred_fallthru
      _
    // Predicated region
    $region6: #{tpu_custom_call.1} parent=1 // pred_check
      _
    $region7: #{tpu_custom_call.1} parent=1 // pred_check_branch
      %16 = sbr.rel (0) target = $region9
    $region8: #{tpu_custom_call.1} parent=1 // pred_region
      _
    $region9: #{tpu_custom_call.1} parent=1 // pred_fallthru
      _
    // Predicated region
    $region10: #{tpu_custom_call.1} parent=1 // pred_check
      _
    $region11: #{tpu_custom_call.1} parent=1 // pred_check_branch
      %18 = sbr.rel (0) target = $region13
    $region12: #{tpu_custom_call.1} parent=1 // pred_region
      _
    $region13: #{tpu_custom_call.1} parent=1 // pred_fallthru
      _
    // Predicated region
    $region14: #{tpu_custom_call.1} parent=1 // pred_check
      _
    $region15: #{tpu_custom_call.1} parent=1 // pred_check_branch
      %20 = sbr.rel (0) target = $region17
    $region16: #{tpu_custom_call.1} parent=1 // pred_region
      _
    $region17: #{tpu_custom_call.1} parent=1 // pred_fallthru
      _
    // Predicated region
    $region18: #{tpu_custom_call.1} parent=1 // pred_check
      _
    $region19: #{tpu_custom_call.1} parent=1 // pred_check_branch
      %22 = sbr.rel (0) target = $region21
    $region20: #{tpu_custom_call.1} parent=1 // pred_region
      _
    $region21: #{tpu_custom_call.1} parent=1 // pred_fallthru
      _
    %v23 = vld [vmem:[%s1] sm:$0xff]
    %v24 = vld [vmem:[%s1 + $0x8] sm:$0xff]
    %v25 = vld [vmem:[%s1 + $0x10] sm:$0xff]
    %v26 = vld [vmem:[%s1 + $0x18] sm:$0xff]
    %v27 = vld [vmem:[%s2] sm:$0xff]
    %v28 = vld [vmem:[%s2 + $0x8] sm:$0xff]
    %v29 = vld [vmem:[%s2 + $0x10] sm:$0xff]
    %v30 = vld [vmem:[%s2 + $0x18] sm:$0xff]
    %v31 = vld [vmem:[%s3] sm:$0xff]
    %v32 = vld [vmem:[%s3 + $0x8] sm:$0xff]
    %v33 = vld [vmem:[%s3 + $0x10] sm:$0xff]
    %v34 = vld [vmem:[%s3 + $0x18] sm:$0xff]
    %v35 = vld [vmem:[#allocation2] sm:$0x1]
    %v36 = vld [vmem:[%s0] sm:$0xff]
    %38 = vset.pattern.permute.xlu0 0
    %39 = vperm.xlu0 %38, %v23
    %v40 = vpop.permute.xlu0 %39
    %43 = vset.pattern.permute.xlu0 0
    %44 = vperm.xlu0 %43, %v24
    %v45 = vpop.permute.xlu0 %44
    %48 = vset.pattern.permute.xlu0 0
    %49 = vperm.xlu0 %48, %v25
    %v50 = vpop.permute.xlu0 %49
    %53 = vset.pattern.permute.xlu0 0
    %54 = vperm.xlu0 %53, %v26
    %v55 = vpop.permute.xlu0 %54
    %v58 = vlaneseq
    %v59 = vshrl.u32 %v58, 7
    %v60 = vsub.s32 0, %v59
    %v61 = vrot.slane %v36, %v60
    %v62 = vlaneseq
    %v63 = vshrl.u32 %v62, 7
    %v64 = vsub.s32 4, %v63
    %v65 = vrot.slane %v36, %v64
    %v68 = vlaneseq
    %v69 = vshrl.u32 %v68, 7
    %v70 = vsub.s32 0, %v69
    %v71 = vrot.slane %v61, %v70
    %v72 = vlaneseq
    %v73 = vshrl.u32 %v72, 7
    %v74 = vsub.s32 0, %v73
    %v75 = vrot.slane %v65, %v74
    %v76 = vmul.f32 %v40, %v71
    %v77 = vmul.f32 %v40, %v75
    %v78 = vmul.f32 %v45, %v71
    %v79 = vmul.f32 %v45, %v75
    %v80 = vmul.f32 %v50, %v71
    %v81 = vmul.f32 %v50, %v75
    %v82 = vmul.f32 %v55, %v71
    %v83 = vmul.f32 %v55, %v75
    %84 = vset.pattern.permute.xlu0 1
    %85 = vperm.xlu0 %84, %v23
    %v86 = vpop.permute.xlu0 %85
    %88 = vset.pattern.permute.xlu0 1
    %89 = vperm.xlu0 %88, %v24
    %v90 = vpop.permute.xlu0 %89
    %92 = vset.pattern.permute.xlu0 1
    %93 = vperm.xlu0 %92, %v25
    %v94 = vpop.permute.xlu0 %93
    %96 = vset.pattern.permute.xlu0 1
    %97 = vperm.xlu0 %96, %v26
    %v98 = vpop.permute.xlu0 %97
    %v100 = vlaneseq
    %v101 = vshrl.u32 %v100, 7
    %v102 = vsub.s32 1, %v101
    %v103 = vrot.slane %v36, %v102
    %v104 = vlaneseq
    %v105 = vshrl.u32 %v104, 7
    %v106 = vsub.s32 5, %v105
    %v107 = vrot.slane %v36, %v106
    %v110 = vlaneseq
    %v111 = vshrl.u32 %v110, 7
    %v112 = vsub.s32 1, %v111
    %v113 = vrot.slane %v103, %v112
    %v114 = vlaneseq
    %v115 = vshrl.u32 %v114, 7
    %v116 = vsub.s32 1, %v115
    %v117 = vrot.slane %v107, %v116
    %v118 = vmul.f32 %v86, %v113
    %v119 = vmul.f32 %v86, %v117
    %v120 = vmul.f32 %v90, %v113
    %v121 = vmul.f32 %v90, %v117
    %v122 = vmul.f32 %v94, %v113
    %v123 = vmul.f32 %v94, %v117
    %v124 = vmul.f32 %v98, %v113
    %v125 = vmul.f32 %v98, %v117
    %v126 = vadd.f32 %v76, %v118
    %v127 = vadd.f32 %v77, %v119
    %v128 = vadd.f32 %v78, %v120
    %v129 = vadd.f32 %v79, %v121
    %v130 = vadd.f32 %v80, %v122
    %v131 = vadd.f32 %v81, %v123
    %v132 = vadd.f32 %v82, %v124
    %v133 = vadd.f32 %v83, %v125
    %134 = vset.pattern.permute.xlu0 2
    %135 = vperm.xlu0 %134, %v23
    %v136 = vpop.permute.xlu0 %135
    %138 = vset.pattern.permute.xlu0 2
    %139 = vperm.xlu0 %138, %v24
    %v140 = vpop.permute.xlu0 %139
    %142 = vset.pattern.permute.xlu0 2
    %143 = vperm.xlu0 %142, %v25
    %v144 = vpop.permute.xlu0 %143
    %146 = vset.pattern.permute.xlu0 2
    %147 = vperm.xlu0 %146, %v26
    %v148 = vpop.permute.xlu0 %147
    %v150 = vlaneseq
    %v151 = vshrl.u32 %v150, 7
    %v152 = vsub.s32 2, %v151
    %v153 = vrot.slane %v36, %v152
    %v154 = vlaneseq
    %v155 = vshrl.u32 %v154, 7
    %v156 = vsub.s32 6, %v155
    %v157 = vrot.slane %v36, %v156
    %v160 = vlaneseq
    %v161 = vshrl.u32 %v160, 7
    %v162 = vsub.s32 2, %v161
    %v163 = vrot.slane %v153, %v162
    %v164 = vlaneseq
    %v165 = vshrl.u32 %v164, 7
    %v166 = vsub.s32 2, %v165
    %v167 = vrot.slane %v157, %v166
    %v168 = vmul.f32 %v136, %v163
    %v169 = vmul.f32 %v136, %v167
    %v170 = vmul.f32 %v140, %v163
    %v171 = vmul.f32 %v140, %v167
    %v172 = vmul.f32 %v144, %v163
    %v173 = vmul.f32 %v144, %v167
    %v174 = vmul.f32 %v148, %v163
    %v175 = vmul.f32 %v148, %v167
    %v176 = vadd.f32 %v126, %v168
    %v177 = vadd.f32 %v127, %v169
    %v178 = vadd.f32 %v128, %v170
    %v179 = vadd.f32 %v129, %v171
    %v180 = vadd.f32 %v130, %v172
    %v181 = vadd.f32 %v131, %v173
    %v182 = vadd.f32 %v132, %v174
    %v183 = vadd.f32 %v133, %v175
    %184 = vset.pattern.permute.xlu0 3
    %185 = vperm.xlu0 %184, %v23
    %v186 = vpop.permute.xlu0 %185
    %188 = vset.pattern.permute.xlu0 3
    %189 = vperm.xlu0 %188, %v24
    %v190 = vpop.permute.xlu0 %189
    %192 = vset.pattern.permute.xlu0 3
    %193 = vperm.xlu0 %192, %v25
    %v194 = vpop.permute.xlu0 %193
    %196 = vset.pattern.permute.xlu0 3
    %197 = vperm.xlu0 %196, %v26
    %v198 = vpop.permute.xlu0 %197
    %v200 = vlaneseq
    %v201 = vshrl.u32 %v200, 7
    %v202 = vsub.s32 3, %v201
    %v203 = vrot.slane %v36, %v202
    %v204 = vlaneseq
    %v205 = vshrl.u32 %v204, 7
    %v206 = vsub.s32 7, %v205
    %v207 = vrot.slane %v36, %v206
    %v210 = vlaneseq
    %v211 = vshrl.u32 %v210, 7
    %v212 = vsub.s32 3, %v211
    %v213 = vrot.slane %v203, %v212
    %v214 = vlaneseq
    %v215 = vshrl.u32 %v214, 7
    %v216 = vsub.s32 3, %v215
    %v217 = vrot.slane %v207, %v216
    %v218 = vmul.f32 %v186, %v213
    %v219 = vmul.f32 %v186, %v217
    %v220 = vmul.f32 %v190, %v213
    %v221 = vmul.f32 %v190, %v217
    %v222 = vmul.f32 %v194, %v213
    %v223 = vmul.f32 %v194, %v217
    %v224 = vmul.f32 %v198, %v213
    %v225 = vmul.f32 %v198, %v217
    %v226 = vadd.f32 %v176, %v218
    %v227 = vadd.f32 %v177, %v219
    %v228 = vadd.f32 %v178, %v220
    %v229 = vadd.f32 %v179, %v221
    %v230 = vadd.f32 %v180, %v222
    %v231 = vadd.f32 %v181, %v223
    %v232 = vadd.f32 %v182, %v224
    %v233 = vadd.f32 %v183, %v225
    %235 = vset.pattern.permute.xlu0 0
    %236 = vperm.xlu0 %235, %v27
    %v237 = vpop.permute.xlu0 %236
    %240 = vset.pattern.permute.xlu0 0
    %241 = vperm.xlu0 %240, %v28
    %v242 = vpop.permute.xlu0 %241
    %245 = vset.pattern.permute.xlu0 0
    %246 = vperm.xlu0 %245, %v29
    %v247 = vpop.permute.xlu0 %246
    %250 = vset.pattern.permute.xlu0 0
    %251 = vperm.xlu0 %250, %v30
    %v252 = vpop.permute.xlu0 %251
    %v254 = vadd.f32 %v226, %v237
    %v255 = vadd.f32 %v227, %v237
    %v256 = vadd.f32 %v228, %v242
    %v257 = vadd.f32 %v229, %v242
    %v258 = vadd.f32 %v230, %v247
    %v259 = vadd.f32 %v231, %v247
    %v260 = vadd.f32 %v232, %v252
    %v261 = vadd.f32 %v233, %v252
    %v262 = vmax.f32 %v254, 0.0
    %v263 = vmax.f32 %v255, 0.0
    %v264 = vmax.f32 %v256, 0.0
    %v265 = vmax.f32 %v257, 0.0
    %v266 = vmax.f32 %v258, 0.0
    %v267 = vmax.f32 %v259, 0.0
    %v268 = vmax.f32 %v260, 0.0
    %v269 = vmax.f32 %v261, 0.0
    %271 = vset.pattern.permute.xlu0 0
    %272 = vperm.xlu0 %271, %v31
    %v273 = vpop.permute.xlu0 %272
    %276 = vset.pattern.permute.xlu0 0
    %277 = vperm.xlu0 %276, %v32
    %v278 = vpop.permute.xlu0 %277
    %281 = vset.pattern.permute.xlu0 0
    %282 = vperm.xlu0 %281, %v33
    %v283 = vpop.permute.xlu0 %282
    %286 = vset.pattern.permute.xlu0 0
    %287 = vperm.xlu0 %286, %v34
    %v288 = vpop.permute.xlu0 %287
    %v290 = vmul.f32 %v262, %v273
    %v291 = vmul.f32 %v263, %v273
    %v292 = vmul.f32 %v264, %v278
    %v293 = vmul.f32 %v265, %v278
    %v294 = vmul.f32 %v266, %v283
    %v295 = vmul.f32 %v267, %v283
    %v296 = vmul.f32 %v268, %v288
    %v297 = vmul.f32 %v269, %v288
    %v298 = vadd.f32 %v290, %v292
    %v299 = vadd.f32 %v298, %v294
    %v300 = vadd.f32 %v299, %v296
    %v301 = vrot.slane %v300, 4
    %v302 = vadd.f32 %v300, %v301
    %v303 = vrot.slane %v302, 2
    %v304 = vadd.f32 %v302, %v303
    %v305 = vrot.slane %v304, 1
    %v306 = vadd.f32 %v304, %v305
    %v307 = vadd.f32 %v291, %v293
    %v308 = vadd.f32 %v307, %v295
    %v309 = vadd.f32 %v308, %v297
    %v310 = vrot.slane %v309, 4
    %v311 = vadd.f32 %v309, %v310
    %v312 = vrot.slane %v311, 2
    %v313 = vadd.f32 %v311, %v312
    %v314 = vrot.slane %v313, 1
    %v315 = vadd.f32 %v313, %v314
    %317 = vset.pattern.permute.xlu0 0
    %318 = vperm.xlu0 %317, %v35
    %v319 = vpop.permute.xlu0 %318
    %v321 = vlaneseq
    %v322 = vshrl.u32 %v321, 7
    %v323 = vsub.s32 0, %v322
    %v324 = vrot.slane %v319, %v323
    %v325 = vadd.f32 %v306, %v324
    %v326 = vadd.f32 %v315, %v324
    %v329 = vcombine.low %v325, %v326
    %v331 = vunpack.c.l.s4 1966171168
    %v332 = vunpack.c.0.s8 %v331
    %v333 = vlaneseq
    %v334 = vshrl.u32 %v333, 7
    %v335 = vsub.s32 %v332, %v334
    %v336 = vrot.slane %v329, %v335
    %v338 = vunpack.c.l.s4 1966171168
    %v339 = vunpack.c.0.s8 %v338
    %v340 = vlaneseq
    %v341 = vshrl.u32 %v340, 7
    %v342 = vsub.s32 %v339, %v341
    %v343 = vrot.slane %v336, %v342
    %v345 = vlaneseq
    %vm346 = vcmp.ge.s32.totalorder %v345, 0
    %vm347 = vcmp.lt.s32.totalorder %v345, 256
    %vm348 = vmand %vm346, %vm347
    %349 = vst.msk [vmem:[#allocation3] sm:$0x3] %vm348, %v343
    // Predicated region
    $region22: #{tpu_custom_call.1} parent=1 // pred_check
      _
    $region23: #{tpu_custom_call.1} parent=1 // pred_check_branch
      %351 = sbr.rel (0) target = $region25
    $region24: #{tpu_custom_call.1} parent=1 // pred_region
      %s353 = ssub.s32 32, 32
      %354 = vsyncadd [#allocation4], %s353
      %s356 = sshll.u32 [#allocation3], 4
      %s357 = int_to_ptr.vmem [resolvable:$true] %s356
      %359 = dma.vmem_to_hbm [thread:$0]  %s357, 32, %s5, [#allocation4]
    $region25: #{tpu_custom_call.1} parent=1 // pred_fallthru
      _
    // Predicated region
    $region26: #{tpu_custom_call.1} parent=1 // pred_check
      _
    $region27: #{tpu_custom_call.1} parent=1 // pred_check_branch
      %361 = sbr.rel (0) target = $region29
    $region28: #{tpu_custom_call.1} parent=1 // pred_region
      %362 = dma.done [#allocation4], 32
    $region29: #{tpu_custom_call.1} parent=1 // pred_fallthru
      _
    %363 = vsyncpa [#allocation4], 1

</llo_original>
